<compile_context>
chip_gen: v5e
topology: v5e:2x2
jax: 0.10.0
libtpu: 0.0.40
codegen_flags: <defaults>
</compile_context>

<pallas_src>
import jax
import jax.numpy as jnp
from jax import lax
from jax.experimental import pallas as pl
from jax.experimental.pallas import tpu as pltpu


def _round_up(v: int, m: int) -> int:
    return (v + m - 1) // m * m


def _linear_composition_kernel(xy_ref, w_ref, b_ref, o_ref, acc_ref):
    # Grid = (M tiles, N tiles, K tiles); K (axis 2) is the reduction axis.
    k = pl.program_id(2)

    @pl.when(k == 0)
    def _():
        # Fold the bias into the accumulator init (one broadcast per output
        # stripe instead of a re-materialized broadcast-add every K step).
        acc_ref[...] = jnp.broadcast_to(b_ref[...], acc_ref.shape)

    # Single fused contraction over the concatenated features:
    #   (tm, tk) . (tn, tk)^T  -> (tm, tn), f32 accumulation on the MXU.
    acc_ref[...] += lax.dot_general(
        xy_ref[...],
        w_ref[...],
        dimension_numbers=(((1,), (1,)), ((), ())),
        preferred_element_type=jnp.float32,
    )

    @pl.when(k == pl.num_programs(2) - 1)
    def _():
        o_ref[...] = acc_ref[...].astype(o_ref.dtype)


def linear_composition(x, y, weight, bias, *, mxu_dtype=jnp.bfloat16):
    """Pallas implementation of torch.nn.Linear(2D -> D)(cat((x, y), dim=1)).

    x, y:    (B, D)
    weight:  (D, 2D)   -- PyTorch nn.Linear convention (out_features, in_features)
    bias:    (D,)
    returns: (B, D) in x.dtype
    """
    B, D = x.shape
    assert y.shape == (B, D)
    assert weight.shape == (D, 2 * D)
    assert bias.shape == (D,)

    # Fold the concat into one K = 2D contraction (single MXU pass per tile).
    xy = jnp.concatenate([x, y], axis=1)  # (B, 2D)

    # Pad to lane/sublane-friendly multiples so every block is (8, 128)-tiled
    # and stores are unmasked. Zero K-padding is exact; padded M rows / N cols
    # are sliced off below.
    K = 2 * D
    Np = _round_up(D, 128)
    Kp = _round_up(K, 128)
    tm = min(128, _round_up(B, 8))
    Bp = _round_up(B, tm)
    tn = 256 if Np % 256 == 0 else 128
    tk = next(t for t in (512, 256, 128) if Kp % t == 0)

    if (Bp, Kp) != (B, K):
        xy = jnp.pad(xy, ((0, Bp - B), (0, Kp - K)))
    w = weight
    if (Np, Kp) != (D, K):
        w = jnp.pad(w, ((0, Np - D), (0, Kp - K)))
    b = bias if Np == D else jnp.pad(bias, (0, Np - D))
    b2d = b.reshape(1, Np).astype(jnp.float32)

    # bf16 on the MXU path (f32 accumulation inside the kernel).
    xy = xy.astype(mxu_dtype)
    w = w.astype(mxu_dtype)

    grid = (Bp // tm, Np // tn, Kp // tk)

    out_p = pl.pallas_call(
        _linear_composition_kernel,
        out_shape=jax.ShapeDtypeStruct((Bp, Np), x.dtype),
        grid_spec=pltpu.PrefetchScalarGridSpec(
            num_scalar_prefetch=0,
            grid=grid,
            in_specs=[
                pl.BlockSpec((tm, tk), lambda i, j, k: (i, k)),   # xy  (M, K)
                pl.BlockSpec((tn, tk), lambda i, j, k: (j, k)),   # W   (N, K), native layout
                pl.BlockSpec((1, tn), lambda i, j, k: (0, j)),    # bias stripe
            ],
            out_specs=pl.BlockSpec((tm, tn), lambda i, j, k: (i, j)),
            scratch_shapes=[pltpu.VMEM((tm, tn), jnp.float32)],
        ),
        compiler_params=pltpu.CompilerParams(
            dimension_semantics=("parallel", "parallel", "arbitrary"),
        ),
    )(xy, w, b2d)

    return out_p[:B, :D]


def _reference(x, y, weight, bias):
    return jnp.concatenate([x, y], axis=1) @ weight.T + bias


if __name__ == "__main__":
    key = jax.random.PRNGKey(0)

    # ---- Case 1: tiny shapes implied by the module (representation_size D, batch B).
    B, D = 8, 32
    kx, ky, kw, kb, key = jax.random.split(key, 5)
    x = jax.random.normal(kx, (B, D), dtype=jnp.float32)
    y = jax.random.normal(ky, (B, D), dtype=jnp.float32)
    bound = 1.0 / jnp.sqrt(jnp.float32(2 * D))
    weight = jax.random.uniform(kw, (D, 2 * D), jnp.float32, -bound, bound)
    bias = jax.random.uniform(kb, (D,), jnp.float32, -bound, bound)

    ref = _reference(x, y, weight, bias)

    # bf16 MXU path (f32 accumulation) -- looser tolerance.
    out_bf16 = jax.block_until_ready(
        linear_composition(x, y, weight, bias, mxu_dtype=jnp.bfloat16))
    assert out_bf16.shape == (B, D)
    assert jnp.allclose(out_bf16, ref, atol=2e-2, rtol=2e-2)

    # f32 MXU path -- tight tolerance.
    out_f32 = jax.block_until_ready(
        linear_composition(x, y, weight, bias, mxu_dtype=jnp.float32))
    assert jnp.allclose(out_f32, ref, atol=1e-5, rtol=1e-5)

    # ---- Case 2: non-aligned, multi-tile shapes exercising the (M, N, K) grid,
    #              K accumulation, and padding/slicing.
    B2, D2 = 136, 320
    kx, ky, kw, kb, key = jax.random.split(key, 5)
    x2 = jax.random.normal(kx, (B2, D2), dtype=jnp.float32)
    y2 = jax.random.normal(ky, (B2, D2), dtype=jnp.float32)
    bound2 = 1.0 / jnp.sqrt(jnp.float32(2 * D2))
    w2 = jax.random.uniform(kw, (D2, 2 * D2), jnp.float32, -bound2, bound2)
    b2 = jax.random.uniform(kb, (D2,), jnp.float32, -bound2, bound2)

    ref2 = _reference(x2, y2, w2, b2)
    out2 = jax.block_until_ready(
        linear_composition(x2, y2, w2, b2, mxu_dtype=jnp.bfloat16))
    assert out2.shape == (B2, D2)
    assert jnp.allclose(out2, ref2, atol=5e-2, rtol=5e-2)

    out2_f32 = jax.block_until_ready(
        linear_composition(x2, y2, w2, b2, mxu_dtype=jnp.float32))
    assert jnp.allclose(out2_f32, ref2, atol=1e-4, rtol=1e-4)

    print("KERNEL_OK")
</pallas_src>

<mosaic_0001>
module attributes {stable_mosaic.version = 11 : i64} {
  func.func @_linear_composition_kernel(%arg0: i32, %arg1: i32, %arg2: i32, %arg3: memref<8x128xbf16, #tpu.memory_space<vmem>>, %arg4: memref<128x128xbf16, #tpu.memory_space<vmem>>, %arg5: memref<1x128xf32, #tpu.memory_space<vmem>>, %arg6: memref<8x128xf32, #tpu.memory_space<vmem>>, %arg7: memref<8x128xf32, #tpu.memory_space<vmem>>) attributes {dimension_semantics = [#tpu.dimension_semantics<parallel>, #tpu.dimension_semantics<parallel>, #tpu.dimension_semantics<arbitrary>], iteration_bounds = array<i64: 1, 1, 1>, scalar_prefetch = 0 : i64, scratch_operands = 1 : i64, tpu.core_type = #tpu.core_type<tc>, window_params = [{transform_indices = @transform_0, window_bounds = array<i64: 8, 128>}, {transform_indices = @transform_1, window_bounds = array<i64: 128, 128>}, {transform_indices = @transform_2, window_bounds = array<i64: 1, 128>}, {transform_indices = @transform_3, window_bounds = array<i64: 8, 128>}]} {
    %c0_i32 = arith.constant 0 : i32
    %0 = arith.cmpi eq, %arg2, %c0_i32 : i32
    %1 = arith.extui %0 : i1 to i32
    %c0_i32_0 = arith.constant 0 : i32
    %2 = arith.cmpi ne, %1, %c0_i32_0 : i32
    scf.if %2 {
      %c0_10 = arith.constant 0 : index
      %c0_11 = arith.constant 0 : index
      %12 = vector.load %arg5[%c0_10, %c0_11] : memref<1x128xf32, #tpu.memory_space<vmem>>, vector<1x128xf32>
      %13 = vector.shape_cast %12 : vector<1x128xf32> to vector<1x128xf32>
      %14 = vector.broadcast %13 : vector<1x128xf32> to vector<8x128xf32>
      %c0_12 = arith.constant 0 : index
      %c0_13 = arith.constant 0 : index
      %15 = vector.load %arg7[%c0_12, %c0_13] : memref<8x128xf32, #tpu.memory_space<vmem>>, vector<8x128xf32>
      tpu.vector_store %arg7[%c0_12, %c0_13], %14 {strides = array<i32>} : memref<8x128xf32, #tpu.memory_space<vmem>>, vector<8x128xf32>,
    } else {
    }
    %c0 = arith.constant 0 : index
    %c0_1 = arith.constant 0 : index
    %3 = vector.load %arg7[%c0, %c0_1] : memref<8x128xf32, #tpu.memory_space<vmem>>, vector<8x128xf32>
    %c0_2 = arith.constant 0 : index
    %c0_3 = arith.constant 0 : index
    %4 = vector.load %arg3[%c0_2, %c0_3] : memref<8x128xbf16, #tpu.memory_space<vmem>>, vector<8x128xbf16>
    %c0_4 = arith.constant 0 : index
    %c0_5 = arith.constant 0 : index
    %5 = vector.load %arg4[%c0_4, %c0_5] : memref<128x128xbf16, #tpu.memory_space<vmem>>, vector<128x128xbf16>
    %cst = arith.constant dense<0.000000e+00> : vector<8x128xf32>
    %6 = tpu.matmul %4, %5, %cst {dimension_numbers = #tpu.dot_dimension_numbers<[1], [1], [0], [0], [0, 0, 1, 0], [], []>} : vector<8x128xbf16>, vector<128x128xbf16>, vector<8x128xf32> -> vector<8x128xf32>
    %7 = arith.addf %3, %6 : vector<8x128xf32>
    %c0_6 = arith.constant 0 : index
    %c0_7 = arith.constant 0 : index
    %8 = vector.load %arg7[%c0_6, %c0_7] : memref<8x128xf32, #tpu.memory_space<vmem>>, vector<8x128xf32>
    tpu.vector_store %arg7[%c0_6, %c0_7], %7 {strides = array<i32>} : memref<8x128xf32, #tpu.memory_space<vmem>>, vector<8x128xf32>,
    %c0_i32_8 = arith.constant 0 : i32
    %9 = arith.cmpi eq, %arg2, %c0_i32_8 : i32
    %10 = arith.extui %9 : i1 to i32
    %c0_i32_9 = arith.constant 0 : i32
    %11 = arith.cmpi ne, %10, %c0_i32_9 : i32
    scf.if %11 {
      %c0_10 = arith.constant 0 : index
      %c0_11 = arith.constant 0 : index
      %12 = vector.load %arg7[%c0_10, %c0_11] : memref<8x128xf32, #tpu.memory_space<vmem>>, vector<8x128xf32>
      %c0_12 = arith.constant 0 : index
      %c0_13 = arith.constant 0 : index
      %13 = vector.load %arg6[%c0_12, %c0_13] : memref<8x128xf32, #tpu.memory_space<vmem>>, vector<8x128xf32>
      tpu.vector_store %arg6[%c0_12, %c0_13], %12 {strides = array<i32>} : memref<8x128xf32, #tpu.memory_space<vmem>>, vector<8x128xf32>,
    } else {
    }
    return
  }
  func.func @transform_0(%arg0: i32, %arg1: i32, %arg2: i32) -> (i32, i32) {
    %c0_i32 = arith.constant 0 : i32
    return %arg0, %arg2 : i32, i32
  }
  func.func @transform_1(%arg0: i32, %arg1: i32, %arg2: i32) -> (i32, i32) {
    %c0_i32 = arith.constant 0 : i32
    return %arg1, %arg2 : i32, i32
  }
  func.func @transform_2(%arg0: i32, %arg1: i32, %arg2: i32) -> (i32, i32) {
    %c0_i32 = arith.constant 0 : i32
    %c0_i32_0 = arith.constant 0 : i32
    return %c0_i32, %arg1 : i32, i32
  }
  func.func @transform_3(%arg0: i32, %arg1: i32, %arg2: i32) -> (i32, i32) {
    %c0_i32 = arith.constant 0 : i32
    return %arg0, %arg1 : i32, i32
  }
}

</mosaic_0001>

<llo_original>
// kernel: tpu_custom_call.1
$region0: #{tpu_custom_call.1}
  #allocation0 [shape = 'u32[]', space=smem, size = 0x4, offset = 0x4, fixed_abs, tag = 'smem constant byte address 0x4 - core index']
  #allocation1 [shape = 'u32[72,128]{1,0:T(1,128)}', space=vmem, size = 0x9000, scoped, tag = 'internal scratch']
  #allocation2 [shape = 'f32[8,128]{1,0:T(8,128)}', space=vmem, size = 0x1000, scoped, tag = 'scratch operand']
  %s0 = inlined_call_operand.hbm [shape: bf16[8,128], index: 0, kind: input, shape index: {}]
  %s1 = inlined_call_operand.hbm [shape: bf16[128,128], index: 1, kind: input, shape index: {}]
  %s2 = inlined_call_operand.vmem [shape: f32[1,128], index: 2, kind: input, shape index: {}]
  %s3 = inlined_call_operand.hbm [shape: f32[8,128], index: 3, kind: output, shape index: {}]
  %s4 = sld [smem:[#allocation0]]
  $region38: #{tpu_custom_call.1} parent=0
    _
  %s6 = ssub.s32 1, %s4
  %s7 = scalar_select 0, %s6, %s4
  $region1: #{tpu_custom_call.1} parent=0
    #allocation3 [shape = 'u8[2048]{0}', space=vmem, size = 0x800, scoped, tag = 'input window, operand 0, single buffered']
    #allocation4 [shape = 's32[1]{0}', space=sflag, size = 0x4, scoped, tag = 'scoped memory for tpu_custom_call.1']
    #allocation5 [shape = 's32[1]{0}', space=sflag, size = 0x4, scoped, tag = 'scoped memory for tpu_custom_call.1']
    #allocation6 [shape = 'u8[32768]{0}', space=vmem, size = 0x8000, scoped, tag = 'input window, operand 1, single buffered']
    #allocation7 [shape = 's32[1]{0}', space=sflag, size = 0x4, scoped, tag = 'scoped memory for tpu_custom_call.1']
    #allocation8 [shape = 'u8[4096]{0}', space=vmem, size = 0x1000, scoped, tag = 'output window, operand 0, single buffered']
    %8 = vsyncpa [#allocation4], 0
    %9 = vsyncpa [#allocation7], 0
    %10 = vsyncpa [#allocation5], 0
    // Predicated region
    $region2: #{tpu_custom_call.1} parent=1 // pred_check
      _
    $region3: #{tpu_custom_call.1} parent=1 // pred_check_branch
      %12 = sbr.rel (0) target = $region5
    $region4: #{tpu_custom_call.1} parent=1 // pred_region
      %14 = vsyncadd [#allocation4], 0
      %s16 = sshll.u32 %s0, 4
      %s17 = int_to_ptr.hbm [resolvable:$true] %s16
      %s18 = sshll.u32 [#allocation3], 4
      %s19 = int_to_ptr.vmem [resolvable:$true] %s18
      %21 = dma.hbm_to_vmem [thread:$0]  %s17, 64, %s19, [#allocation4]
    $region5: #{tpu_custom_call.1} parent=1 // pred_fallthru
      _
    // Predicated region
    $region6: #{tpu_custom_call.1} parent=1 // pred_check
      _
    $region7: #{tpu_custom_call.1} parent=1 // pred_check_branch
      %23 = sbr.rel (0) target = $region9
    $region8: #{tpu_custom_call.1} parent=1 // pred_region
      %25 = vsyncadd [#allocation7], 0
      %s26 = sshll.u32 %s1, 4
      %s27 = int_to_ptr.hbm [resolvable:$true] %s26
      %s28 = sshll.u32 [#allocation6], 4
      %s29 = int_to_ptr.vmem [resolvable:$true] %s28
      %34 = dma.hbm_to_vmem [thread:$0]  %s27, 1024, %s29, [#allocation7], 64, 64, 4
    $region9: #{tpu_custom_call.1} parent=1 // pred_fallthru
      _
    // Predicated region
    $region10: #{tpu_custom_call.1} parent=1 // pred_check
      _
    $region11: #{tpu_custom_call.1} parent=1 // pred_check_branch
      %36 = sbr.rel (0) target = $region13
    $region12: #{tpu_custom_call.1} parent=1 // pred_region
      _
    $region13: #{tpu_custom_call.1} parent=1 // pred_fallthru
      _
    // Predicated region
    $region14: #{tpu_custom_call.1} parent=1 // pred_check
      _
    $region15: #{tpu_custom_call.1} parent=1 // pred_check_branch
      %38 = sbr.rel (0) target = $region17
    $region16: #{tpu_custom_call.1} parent=1 // pred_region
      %40 = dma.done [#allocation4], 64
    $region17: #{tpu_custom_call.1} parent=1 // pred_fallthru
      _
    // Predicated region
    $region18: #{tpu_custom_call.1} parent=1 // pred_check
      _
    $region19: #{tpu_custom_call.1} parent=1 // pred_check_branch
      %42 = sbr.rel (0) target = $region21
    $region20: #{tpu_custom_call.1} parent=1 // pred_region
      %44 = dma.done [#allocation7], 1024
    $region21: #{tpu_custom_call.1} parent=1 // pred_fallthru
      _
    %p45 = scmp.eq.s32.totalorder 0, 0
    // Predicated region
    $region22: #{tpu_custom_call.1} parent=1 // pred_check
      %p46 = pneg %p45
    $region23: #{tpu_custom_call.1} parent=1 // pred_check_branch
      %48 = sbr.rel (%p46) target = $region25
    $region24: #{tpu_custom_call.1} parent=1 // pred_region
      %v49 = vld [vmem:[%s2] sm:$0x1]
      %v51 = vperm.slane %v49, 0
      %53 = vst [vmem:[#allocation2] sm:$0xff] %v51
    $region25: #{tpu_custom_call.1} parent=1 // pred_fallthru
      _
    %v54 = vld [vmem:[#allocation2] sm:$0xff]
    %v55 = vld [vmem:[#allocation3] sm:$0xf]
    %v56 = vld [vmem:[#allocation6] sm:$0xf]
    %v57 = vld [vmem:[#allocation6 + $0x4] sm:$0xf]
    %v58 = vld [vmem:[#allocation6 + $0x8] sm:$0xf]
    %v59 = vld [vmem:[#allocation6 + $0xc] sm:$0xf]
    %v60 = vld [vmem:[#allocation6 + $0x10] sm:$0xf]
    %v61 = vld [vmem:[#allocation6 + $0x14] sm:$0xf]
    %v62 = vld [vmem:[#allocation6 + $0x18] sm:$0xf]
    %v63 = vld [vmem:[#allocation6 + $0x1c] sm:$0xf]
    %v64 = vld [vmem:[#allocation6 + $0x20] sm:$0xf]
    %v65 = vld [vmem:[#allocation6 + $0x24] sm:$0xf]
    %v66 = vld [vmem:[#allocation6 + $0x28] sm:$0xf]
    %v67 = vld [vmem:[#allocation6 + $0x2c] sm:$0xf]
    %v68 = vld [vmem:[#allocation6 + $0x30] sm:$0xf]
    %v69 = vld [vmem:[#allocation6 + $0x34] sm:$0xf]
    %v70 = vld [vmem:[#allocation6 + $0x38] sm:$0xf]
    %v71 = vld [vmem:[#allocation6 + $0x3c] sm:$0xf]
    %v88 = vunpack.c.l.b16 %v56
    %v89 = vunpack.c.l.b16 %v57
    %v90 = vunpack.c.l.b16 %v58
    %v91 = vunpack.c.l.b16 %v59
    %v92 = vunpack.c.l.b16 %v60
    %v93 = vunpack.c.l.b16 %v61
    %v94 = vunpack.c.l.b16 %v62
    %v95 = vunpack.c.l.b16 %v63
    %v96 = vunpack.c.l.b16 %v64
    %v97 = vunpack.c.l.b16 %v65
    %v98 = vunpack.c.l.b16 %v66
    %v99 = vunpack.c.l.b16 %v67
    %v100 = vunpack.c.l.b16 %v68
    %v101 = vunpack.c.l.b16 %v69
    %v102 = vunpack.c.l.b16 %v70
    %v103 = vunpack.c.l.b16 %v71
    %v104 = vpack.c.b16 %v89, %v88
    %v105 = vpack.c.b16 %v91, %v90
    %v106 = vpack.c.b16 %v93, %v92
    %v107 = vpack.c.b16 %v95, %v94
    %v108 = vpack.c.b16 %v97, %v96
    %v109 = vpack.c.b16 %v99, %v98
    %v110 = vpack.c.b16 %v101, %v100
    %v111 = vpack.c.b16 %v103, %v102
    %120 = vmatpush.bf16.xpose.msra.mxu0 %v111
    %121 = vmatpush.bf16.xpose.msra.mxu0 %v110
    %122 = vmatpush.bf16.xpose.msra.mxu0 %v109
    %123 = vmatpush.bf16.xpose.msra.mxu0 %v108
    %124 = vmatpush.bf16.xpose.msra.mxu0 %v107
    %125 = vmatpush.bf16.xpose.msra.mxu0 %v106
    %126 = vmatpush.bf16.xpose.msra.mxu0 %v105
    %127 = vmatpush.bf16.xpose.msra.mxu0 %v104
    %128 = vmatmul.bf16.gmra.mxu0 %v55
    %v129 = vpop.f32.mrf.mxu0
    %v130 = vadd.f32 0.0, %v129
    %v131 = vpop.f32.mrf.mxu0
    %132 = vdwg.mxu0
    %v133 = vadd.f32 %v54, %v130
    %134 = vst [vmem:[#allocation2] sm:$0xff] %v133
    // Predicated region
    $region26: #{tpu_custom_call.1} parent=1 // pred_check
      %p135 = pneg %p45
    $region27: #{tpu_custom_call.1} parent=1 // pred_check_branch
      %137 = sbr.rel (%p135) target = $region29
    $region28: #{tpu_custom_call.1} parent=1 // pred_region
      %v138 = vld [vmem:[#allocation2] sm:$0xff]
      %139 = vst [vmem:[#allocation8] sm:$0xff] %v138
    $region29: #{tpu_custom_call.1} parent=1 // pred_fallthru
      _
    // Predicated region
    $region30: #{tpu_custom_call.1} parent=1 // pred_check
      _
    $region31: #{tpu_custom_call.1} parent=1 // pred_check_branch
      %141 = sbr.rel (0) target = $region33
    $region32: #{tpu_custom_call.1} parent=1 // pred_region
      %143 = vsyncadd [#allocation5], 0
      %s145 = sshll.u32 [#allocation8], 4
      %s146 = int_to_ptr.vmem [resolvable:$true] %s145
      %s147 = sshll.u32 %s3, 4
      %s148 = int_to_ptr.hbm [resolvable:$true] %s147
      %150 = dma.vmem_to_hbm [thread:$0]  %s146, 128, %s148, [#allocation5]
    $region33: #{tpu_custom_call.1} parent=1 // pred_fallthru
      _
    // Predicated region
    $region34: #{tpu_custom_call.1} parent=1 // pred_check
      _
    $region35: #{tpu_custom_call.1} parent=1 // pred_check_branch
      %152 = sbr.rel (0) target = $region37
    $region36: #{tpu_custom_call.1} parent=1 // pred_region
      %154 = dma.done [#allocation5], 128
    $region37: #{tpu_custom_call.1} parent=1 // pred_fallthru
      _
    %155 = vsyncpa [#allocation4], 1
    %156 = vsyncpa [#allocation7], 1
    %157 = vsyncpa [#allocation5], 1

</llo_original>
